<compile_context>
chip_gen: v5e
topology: v5e:2x2
jax: 0.10.0
libtpu: 0.0.40
codegen_flags: <defaults>
</compile_context>

<pallas_src>
import functools

import jax
import jax.numpy as jnp
from jax.experimental import pallas as pl
from jax.experimental.pallas import tpu as pltpu

# PyTorch / original SELU paper constants.
_SELU_ALPHA = 1.6732632423543772
_SELU_SCALE = 1.0507009873554805


def _selu_kernel(x_ref, o_ref, *, compute_dtype):
    x = x_ref[...].astype(compute_dtype)
    # min(x, 0) guards exp against overflow on the branch `where` discards.
    # (exp(min(x,0)) - 1 loses a little precision for tiny |x|; abs error stays
    # well under 1e-6 after the alpha*scale factor.)
    neg = _SELU_ALPHA * (jnp.exp(jnp.minimum(x, 0.0)) - 1.0)
    o_ref[...] = (_SELU_SCALE * jnp.where(x > 0.0, x, neg)).astype(o_ref.dtype)


def _is_v6_or_newer() -> bool:
    """Conservative device probe: True only for v6e / v7x class chips."""
    try:
        kind = jax.devices()[0].device_kind.lower()
    except Exception:
        return False
    return ("v6" in kind) or ("v7" in kind)


def selu_pallas(x: jax.Array) -> jax.Array:
    """Elementwise SELU via a tiled, lane-dense Pallas kernel (any shape / float dtype)."""
    orig_shape = x.shape
    dtype = x.dtype
    n = x.size
    if n == 0:
        return x
    itemsize = jnp.dtype(dtype).itemsize

    is_new = _is_v6_or_newer()
    # ~4 MiB blocks on v6e/v7x (amortize per-step overhead at high HBM BW),
    # ~2 MiB on v5e/older (keeps 4x double-buffered blocks inside 16 MiB scoped VMEM).
    block_bytes = (4 if is_new else 2) * 1024 * 1024
    # bf16 native compute only where the VPU/EUP support it (v6e/v7x).
    compute_dtype = dtype if (dtype == jnp.bfloat16 and is_new) else jnp.float32
    # Native sublane tile: 8 rows for f32, 16 for bf16/f16, 32 for int8/fp8.
    sublane = 8 * max(1, 4 // itemsize)

    kernel = functools.partial(_selu_kernel, compute_dtype=compute_dtype)
    cost = pl.CostEstimate(
        flops=6 * n, transcendentals=n, bytes_accessed=2 * n * itemsize
    )
    cparams = pltpu.CompilerParams(dimension_semantics=("parallel",))

    x_flat = x.reshape(-1)

    if n % 128 == 0:
        # Fast path: free contiguous reshape to a lane-dense 2-D slab
        # (covers the test shape 2*4*16*16 = 2048).
        lanes = 128
        for cand in (1024, 512, 256):
            if n % cand == 0:
                lanes = cand
                break
        rows = n // lanes

        block_rows = max(
            sublane, (block_bytes // (lanes * itemsize)) // sublane * sublane
        )
        # Guarantee >= 2 grid steps on non-tiny arrays so the "parallel" axis can
        # shard across both TensorCores on dual-TC chips (v7x).
        if n * itemsize >= (512 * 1024) and 2 * block_rows > rows:
            block_rows = max(sublane, (rows // 2 // sublane) * sublane)
        if block_rows >= rows:
            block_rows = rows  # full extent: always legal, single block
        grid = (pl.cdiv(rows, block_rows),)

        x2d = x_flat.reshape(rows, lanes)
        out2d = pl.pallas_call(
            kernel,
            out_shape=jax.ShapeDtypeStruct((rows, lanes), dtype),
            grid=grid,
            in_specs=[pl.BlockSpec((block_rows, lanes), lambda i: (i, 0))],
            out_specs=pl.BlockSpec((block_rows, lanes), lambda i: (i, 0)),
            compiler_params=cparams,
            cost_estimate=cost,
        )(x2d)
        return out2d.reshape(orig_shape)

    # General path (size not a multiple of 128): keep the array 1-D and let the
    # final grid block be partial -- Pallas masks the OOB tail.  No jnp.pad and
    # no trailing slice, so no extra HBM round-trips on this bandwidth-bound op.
    block_n = max(1024, (block_bytes // itemsize) // 1024 * 1024)
    if n * itemsize >= (512 * 1024) and 2 * block_n > n:
        block_n = max(1024, (n // 2 // 1024) * 1024)
    if block_n >= n:
        block_n = n
    grid = (pl.cdiv(n, block_n),)

    out_flat = pl.pallas_call(
        kernel,
        out_shape=jax.ShapeDtypeStruct((n,), dtype),
        grid=grid,
        in_specs=[pl.BlockSpec((block_n,), lambda i: (i,))],
        out_specs=pl.BlockSpec((block_n,), lambda i: (i,)),
        compiler_params=cparams,
        cost_estimate=cost,
    )(x_flat)
    return out_flat.reshape(orig_shape)


def _selu_ref(x):
    xf = x.astype(jnp.float32)
    y = _SELU_SCALE * jnp.where(
        xf > 0.0, xf, _SELU_ALPHA * (jnp.exp(jnp.minimum(xf, 0.0)) - 1.0)
    )
    return y.astype(x.dtype)


if __name__ == "__main__":
    key = jax.random.PRNGKey(0)
    x = jax.random.normal(key, (2, 4, 16, 16), dtype=jnp.float32)

    out = jax.jit(selu_pallas)(x)
    jax.block_until_ready(out)

    ref = _selu_ref(x)
    assert out.shape == x.shape and out.dtype == x.dtype
    assert jnp.allclose(out, ref, atol=1e-6, rtol=1e-6), "mismatch vs reference SELU"

    print("KERNEL_OK")
</pallas_src>

<mosaic_0001>
module attributes {stable_mosaic.version = 11 : i64} {
  func.func @_selu_kernel(%arg0: i32, %arg1: memref<2x1024xf32, #tpu.memory_space<vmem>>, %arg2: memref<2x1024xf32, #tpu.memory_space<vmem>>) attributes {dimension_semantics = [#tpu.dimension_semantics<parallel>], iteration_bounds = array<i64: 1>, scalar_prefetch = 0 : i64, scratch_operands = 0 : i64, tpu.core_type = #tpu.core_type<tc>, window_params = [{transform_indices = @transform_0, window_bounds = array<i64: 2, 1024>}, {transform_indices = @transform_1, window_bounds = array<i64: 2, 1024>}]} {
    %c0 = arith.constant 0 : index
    %c0_0 = arith.constant 0 : index
    %0 = vector.load %arg1[%c0, %c0_0] : memref<2x1024xf32, #tpu.memory_space<vmem>>, vector<2x1024xf32>
    %cst = arith.constant 0.000000e+00 : f32
    %1 = vector.broadcast %cst : f32 to vector<2x1024xf32>
    %2 = arith.minimumf %0, %1 : vector<2x1024xf32>
    %3 = math.exp %2 : vector<2x1024xf32>
    %cst_1 = arith.constant 1.000000e+00 : f32
    %4 = vector.broadcast %cst_1 : f32 to vector<2x1024xf32>
    %5 = arith.subf %3, %4 : vector<2x1024xf32>
    %cst_2 = arith.constant 1.67326319 : f32
    %6 = vector.broadcast %cst_2 : f32 to vector<2x1024xf32>
    %7 = arith.mulf %6, %5 : vector<2x1024xf32>
    %cst_3 = arith.constant 0.000000e+00 : f32
    %8 = vector.broadcast %cst_3 : f32 to vector<2x1024xf32>
    %9 = arith.cmpf ogt, %0, %8 : vector<2x1024xf32>
    %10 = arith.select %9, %0, %7 : vector<2x1024xi1>, vector<2x1024xf32>
    %cst_4 = arith.constant 1.05070102 : f32
    %11 = vector.broadcast %cst_4 : f32 to vector<2x1024xf32>
    %12 = arith.mulf %11, %10 : vector<2x1024xf32>
    %c0_5 = arith.constant 0 : index
    %c0_6 = arith.constant 0 : index
    %13 = vector.load %arg2[%c0_5, %c0_6] : memref<2x1024xf32, #tpu.memory_space<vmem>>, vector<2x1024xf32>
    tpu.vector_store %arg2[%c0_5, %c0_6], %12 {strides = array<i32>} : memref<2x1024xf32, #tpu.memory_space<vmem>>, vector<2x1024xf32>,
    return
  }
  func.func @transform_0(%arg0: i32) -> (i32, i32) {
    %c0_i32 = arith.constant 0 : i32
    %c0_i32_0 = arith.constant 0 : i32
    return %arg0, %c0_i32 : i32, i32
  }
  func.func @transform_1(%arg0: i32) -> (i32, i32) {
    %c0_i32 = arith.constant 0 : i32
    %c0_i32_0 = arith.constant 0 : i32
    return %arg0, %c0_i32 : i32, i32
  }
}

</mosaic_0001>

<llo_original>
// kernel: selu_pallas.1
$region0: #{selu_pallas.1}
  #allocation0 [shape = 'u32[]', space=smem, size = 0x4, offset = 0x4, fixed_abs, tag = 'smem constant byte address 0x4 - core index']
  #allocation1 [shape = 'u32[72,128]{1,0:T(1,128)}', space=vmem, size = 0x9000, scoped, tag = 'internal scratch']
  %s0 = inlined_call_operand.vmem [shape: f32[2,1024], index: 0, kind: input, shape index: {}]
  %s1 = inlined_call_operand.vmem [shape: f32[2,1024], index: 1, kind: output, shape index: {}]
  %s2 = sld [smem:[#allocation0]]
  $region14: #{selu_pallas.1} parent=0
    _
  %s4 = ssub.s32 1, %s2
  %s5 = scalar_select 0, %s4, %s2
  // Predicated region
  $region2: #{selu_pallas.1} parent=0 // pred_check
    _
  $region3: #{selu_pallas.1} parent=0 // pred_check_branch
    %7 = sbr.rel (0) target = $region5
  $region4: #{selu_pallas.1} parent=0 // pred_region
    _
  $region5: #{selu_pallas.1} parent=0 // pred_fallthru
    _
  %v8 = vld [vmem:[%s0] sm:$0xff]
  %v9 = vld [vmem:[%s0 + $0x8] sm:$0xff]
  %v10 = vmin.f32 %v8, 0.0
  %v11 = vmin.f32 %v9, 0.0
  %v12 = vmul.f32 %v10, 1.442695
  %v13 = vpow.pop %v12
  %v14 = vmul.f32 %v11, 1.442695
  %v15 = vpow.pop %v14
  %v16 = vsub.f32 %v13, 1.0
  %v17 = vsub.f32 %v15, 1.0
  %v18 = vmul.f32 %v16, 1.6732632
  %v19 = vmul.f32 %v17, 1.6732632
  %vm20 = vcmp.gt.f32.partialorder %v8, 0.0
  %vm21 = vcmp.gt.f32.partialorder %v9, 0.0
  %v22 = vsel %vm20, %v8, %v18
  %v23 = vsel %vm21, %v9, %v19
  %v24 = vmul.f32 %v22, 1.050701
  %v25 = vmul.f32 %v23, 1.050701
  %26 = vst [vmem:[%s1] sm:$0xff] %v24
  %27 = vst [vmem:[%s1 + $0x8] sm:$0xff] %v25
  // Predicated region
  $region6: #{selu_pallas.1} parent=0 // pred_check
    _
  $region7: #{selu_pallas.1} parent=0 // pred_check_branch
    %29 = sbr.rel (0) target = $region9
  $region8: #{selu_pallas.1} parent=0 // pred_region
    _
  $region9: #{selu_pallas.1} parent=0 // pred_fallthru
    _
  // Predicated region
  $region10: #{selu_pallas.1} parent=0 // pred_check
    _
  $region11: #{selu_pallas.1} parent=0 // pred_check_branch
    %31 = sbr.rel (0) target = $region13
  $region12: #{selu_pallas.1} parent=0 // pred_region
    _
  $region13: #{selu_pallas.1} parent=0 // pred_fallthru
    _

</llo_original>
